<compile_context>
chip_gen: v6e
topology: v6e:2x2x1
jax: 0.10.0
libtpu: 0.0.40
codegen_flags: <defaults>
</compile_context>

<pallas_src>
import functools

import jax
import jax.numpy as jnp
from jax.experimental import pallas as pl
from jax.experimental.pallas import tpu as pltpu


# ---------------------------------------------------------------------------
# Stage 1: tiled global max pool over the spatial axis.
# ---------------------------------------------------------------------------
def _make_pool_kernel(hw: int, ts: int, needs_mask: bool):
    def pool_kernel(x_ref, pooled_ref):
        s = pl.program_id(1)

        @pl.when(s == 0)
        def _():
            pooled_ref[...] = jnp.full_like(pooled_ref, -jnp.inf)

        tile = x_ref[...]                                   # (TR, TS)
        if needs_mask:
            # Mask columns beyond H*W (only possible on the last, partial
            # spatial block) so padded garbage cannot win the max.
            cols = s * ts + jax.lax.broadcasted_iota(jnp.int32, tile.shape, 1)
            tile = jnp.where(cols < hw, tile, -jnp.inf)

        pooled_ref[...] = jnp.maximum(
            pooled_ref[...], jnp.max(tile, axis=-1, keepdims=True))

    return pool_kernel


# ---------------------------------------------------------------------------
# Stage 2: tiny channel MLP (two 1x1 convs) + sigmoid, fully in VMEM.
# ---------------------------------------------------------------------------
def _mlp_sigmoid_kernel(p_ref, w1t_ref, b1_ref, w2t_ref, b2_ref, o_ref):
    h = jnp.dot(p_ref[...], w1t_ref[...],
                preferred_element_type=jnp.float32) + b1_ref[...]     # (N, hidden)
    y = jnp.dot(h, w2t_ref[...],
                preferred_element_type=jnp.float32) + b2_ref[...]     # (N, C)
    o_ref[...] = jax.nn.sigmoid(y).astype(o_ref.dtype)


def _pick_tile(dim: int, target: int, align: int) -> int:
    """Largest tile <= target that is either the full dim or a multiple of align."""
    if dim <= target:
        return dim
    return max((target // align) * align, align)


@functools.partial(jax.jit, static_argnames=("tr_target", "ts_target"))
def soft_channels(x_nchw, w1, b1, w2, b2, *, tr_target=512, ts_target=2048):
    """x_nchw: (N, C, H, W); w1: (hidden, C); b1: (hidden,); w2: (C, hidden); b2: (C,)."""
    n, c, h, w = x_nchw.shape
    hidden = w1.shape[0]
    rows = n * c
    hw = h * w

    x2d = x_nchw.reshape(rows, hw).astype(jnp.float32)

    # Tile selection: sublane-aligned rows, lane-aligned spatial.
    tr = _pick_tile(rows, tr_target, 8)
    ts = _pick_tile(hw, ts_target, 128)
    grid = (pl.cdiv(rows, tr), pl.cdiv(hw, ts))
    needs_mask = (hw % ts) != 0

    pooled = pl.pallas_call(
        _make_pool_kernel(hw, ts, needs_mask),
        out_shape=jax.ShapeDtypeStruct((rows, 1), jnp.float32),
        grid_spec=pltpu.PrefetchScalarGridSpec(
            num_scalar_prefetch=0,
            grid=grid,
            in_specs=[pl.BlockSpec((tr, ts), lambda r, s: (r, s))],
            # Same output block across the spatial axis -> resident accumulator.
            out_specs=pl.BlockSpec((tr, 1), lambda r, s: (r, 0)),
        ),
        compiler_params=pltpu.CompilerParams(
            dimension_semantics=("parallel", "arbitrary")),
        cost_estimate=pl.CostEstimate(
            flops=rows * hw,               # vmax comparisons, nominal
            transcendentals=0,
            bytes_accessed=rows * hw * 4 + rows * 4),
    )(x2d)

    # Tiny finalize: (N, C) -> hidden -> (N, C) -> sigmoid.  Weights pre-transposed.
    pooled_nc = pooled.reshape(n, c)
    att = pl.pallas_call(
        _mlp_sigmoid_kernel,
        out_shape=jax.ShapeDtypeStruct((n, c), jnp.float32),
        in_specs=[pl.BlockSpec(memory_space=pltpu.MemorySpace.VMEM)] * 5,
        out_specs=pl.BlockSpec(memory_space=pltpu.MemorySpace.VMEM),
    )(pooled_nc,
      jnp.transpose(w1),            # (C, hidden)
      b1.reshape(1, hidden),
      jnp.transpose(w2),            # (hidden, C)
      b2.reshape(1, c))

    return att.reshape(n, c, 1, 1)


# ---------------------------------------------------------------------------
# Reference + deterministic example.
# ---------------------------------------------------------------------------
def _init_conv1x1_params(key, out_ch, in_ch):
    """Deterministic PyTorch-style Conv2d init (kaiming-uniform-ish)."""
    kw, kb = jax.random.split(key)
    bound = 1.0 / jnp.sqrt(jnp.float32(in_ch))
    weight = jax.random.uniform(kw, (out_ch, in_ch), jnp.float32, -bound, bound)
    bias = jax.random.uniform(kb, (out_ch,), jnp.float32, -bound, bound)
    return weight, bias


def _reference(x_nchw, w1, b1, w2, b2):
    pooled = jnp.max(x_nchw, axis=(2, 3))                   # (N, C)
    h = pooled @ w1.T + b1
    y = h @ w2.T + b2
    return jax.nn.sigmoid(y)[:, :, None, None]


if __name__ == "__main__":
    N, C, H, W = 2, 4, 16, 16
    expansion = 0.5
    hidden = int(expansion * C)

    key = jax.random.PRNGKey(0)
    kx, k1, k2 = jax.random.split(key, 3)

    x = jax.random.normal(kx, (N, C, H, W), jnp.float32)
    w1, b1 = _init_conv1x1_params(k1, hidden, C)   # Conv2d(C -> hidden, 1x1)
    w2, b2 = _init_conv1x1_params(k2, C, hidden)   # Conv2d(hidden -> C, 1x1)

    ref = _reference(x, w1, b1, w2, b2)

    # Production tile sizes (grid collapses to (1,1) at this small shape).
    out_default = jax.block_until_ready(soft_channels(x, w1, b1, w2, b2))
    # Small spatial tile to exercise the multi-step grid reduction path.
    out_tiled = jax.block_until_ready(
        soft_channels(x, w1, b1, w2, b2, ts_target=128))

    assert out_default.shape == (N, C, 1, 1), out_default.shape
    assert jnp.allclose(out_default, ref, atol=1e-5, rtol=1e-5), "default mismatch"
    assert jnp.allclose(out_tiled, ref, atol=1e-5, rtol=1e-5), "tiled mismatch"

    print("KERNEL_OK")
</pallas_src>

<mosaic_0001>
module attributes {stable_mosaic.version = 11 : i64} {
  func.func @pool_kernel(%arg0: i32, %arg1: i32, %arg2: memref<8x256xf32, #tpu.memory_space<vmem>>, %arg3: memref<8x1xf32, #tpu.memory_space<vmem>>) attributes {dimension_semantics = [#tpu.dimension_semantics<parallel>, #tpu.dimension_semantics<arbitrary>], iteration_bounds = array<i64: 1, 1>, scalar_prefetch = 0 : i64, scratch_operands = 0 : i64, tpu.core_type = #tpu.core_type<tc>, window_params = [{transform_indices = @transform_0, window_bounds = array<i64: 8, 256>}, {transform_indices = @transform_1, window_bounds = array<i64: 8, 1>}]} {
    %c0_i32 = arith.constant 0 : i32
    %0 = arith.cmpi eq, %arg1, %c0_i32 : i32
    %1 = arith.extui %0 : i1 to i32
    %c0_i32_0 = arith.constant 0 : i32
    %2 = arith.cmpi ne, %1, %c0_i32_0 : i32
    scf.if %2 {
      %cst_6 = arith.constant 0xFF800000 : f32
      %9 = vector.broadcast %cst_6 : f32 to vector<8x1xf32>
      %c0_7 = arith.constant 0 : index
      %c0_8 = arith.constant 0 : index
      %10 = vector.load %arg3[%c0_7, %c0_8] : memref<8x1xf32, #tpu.memory_space<vmem>>, vector<8x1xf32>
      tpu.vector_store %arg3[%c0_7, %c0_8], %9 {strides = array<i32>} : memref<8x1xf32, #tpu.memory_space<vmem>>, vector<8x1xf32>,
    } else {
    }
    %c0 = arith.constant 0 : index
    %c0_1 = arith.constant 0 : index
    %3 = vector.load %arg2[%c0, %c0_1] : memref<8x256xf32, #tpu.memory_space<vmem>>, vector<8x256xf32>
    %c0_2 = arith.constant 0 : index
    %c0_3 = arith.constant 0 : index
    %4 = vector.load %arg3[%c0_2, %c0_3] : memref<8x1xf32, #tpu.memory_space<vmem>>, vector<8x1xf32>
    %cst = arith.constant dense<0xFF800000> : vector<8xf32>
    %5 = vector.multi_reduction <maximumf>, %3, %cst [1] : vector<8x256xf32> to vector<8xf32>
    %6 = vector.shape_cast %5 : vector<8xf32> to vector<8x1xf32>
    %7 = arith.maximumf %4, %6 : vector<8x1xf32>
    %c0_4 = arith.constant 0 : index
    %c0_5 = arith.constant 0 : index
    %8 = vector.load %arg3[%c0_4, %c0_5] : memref<8x1xf32, #tpu.memory_space<vmem>>, vector<8x1xf32>
    tpu.vector_store %arg3[%c0_4, %c0_5], %7 {strides = array<i32>} : memref<8x1xf32, #tpu.memory_space<vmem>>, vector<8x1xf32>,
    return
  }
  func.func @transform_0(%arg0: i32, %arg1: i32) -> (i32, i32) {
    %c0_i32 = arith.constant 0 : i32
    return %arg0, %arg1 : i32, i32
  }
  func.func @transform_1(%arg0: i32, %arg1: i32) -> (i32, i32) {
    %c0_i32 = arith.constant 0 : i32
    %c0_i32_0 = arith.constant 0 : i32
    return %arg0, %c0_i32 : i32, i32
  }
}

module attributes {stable_mosaic.version = 11 : i64} {
  func.func @_mlp_sigmoid_kernel(%arg0: memref<2x4xf32, #tpu.memory_space<vmem>>, %arg1: memref<4x2xf32, #tpu.memory_space<vmem>>, %arg2: memref<1x2xf32, #tpu.memory_space<vmem>>, %arg3: memref<2x4xf32, #tpu.memory_space<vmem>>, %arg4: memref<1x4xf32, #tpu.memory_space<vmem>>, %arg5: memref<2x4xf32, #tpu.memory_space<vmem>>) attributes {dimension_semantics = [], scalar_prefetch = 0 : i64, scratch_operands = 0 : i64, tpu.core_type = #tpu.core_type<tc>} {
    %c0 = arith.constant 0 : index
    %c0_0 = arith.constant 0 : index
    %0 = vector.load %arg0[%c0, %c0_0] : memref<2x4xf32, #tpu.memory_space<vmem>>, vector<2x4xf32>
    %c0_1 = arith.constant 0 : index
    %c0_2 = arith.constant 0 : index
    %1 = vector.load %arg1[%c0_1, %c0_2] : memref<4x2xf32, #tpu.memory_space<vmem>>, vector<4x2xf32>
    %cst = arith.constant dense<0.000000e+00> : vector<2x2xf32>
    %2 = tpu.matmul %0, %1, %cst {dimension_numbers = #tpu.dot_dimension_numbers<[1], [0], [0], [1], [0, 0, 1, 1], [], []>} : vector<2x4xf32>, vector<4x2xf32>, vector<2x2xf32> -> vector<2x2xf32>
    %c0_3 = arith.constant 0 : index
    %c0_4 = arith.constant 0 : index
    %3 = vector.load %arg2[%c0_3, %c0_4] : memref<1x2xf32, #tpu.memory_space<vmem>>, vector<1x2xf32>
    %4 = vector.broadcast %3 : vector<1x2xf32> to vector<2x2xf32>
    %5 = arith.addf %2, %4 : vector<2x2xf32>
    %c0_5 = arith.constant 0 : index
    %c0_6 = arith.constant 0 : index
    %6 = vector.load %arg3[%c0_5, %c0_6] : memref<2x4xf32, #tpu.memory_space<vmem>>, vector<2x4xf32>
    %cst_7 = arith.constant dense<0.000000e+00> : vector<2x4xf32>
    %7 = tpu.matmul %5, %6, %cst_7 {dimension_numbers = #tpu.dot_dimension_numbers<[1], [0], [0], [1], [0, 0, 1, 1], [], []>} : vector<2x2xf32>, vector<2x4xf32>, vector<2x4xf32> -> vector<2x4xf32>
    %c0_8 = arith.constant 0 : index
    %c0_9 = arith.constant 0 : index
    %8 = vector.load %arg4[%c0_8, %c0_9] : memref<1x4xf32, #tpu.memory_space<vmem>>, vector<1x4xf32>
    %9 = vector.broadcast %8 : vector<1x4xf32> to vector<2x4xf32>
    %10 = arith.addf %7, %9 : vector<2x4xf32>
    %11 = arith.negf %10 : vector<2x4xf32>
    %12 = math.exp %11 : vector<2x4xf32>
    %cst_10 = arith.constant 1.000000e+00 : f32
    %13 = vector.broadcast %cst_10 : f32 to vector<2x4xf32>
    %14 = arith.addf %13, %12 : vector<2x4xf32>
    %15 = arith.divf %13, %14 : vector<2x4xf32>
    %c0_11 = arith.constant 0 : index
    %c0_12 = arith.constant 0 : index
    %16 = vector.load %arg5[%c0_11, %c0_12] : memref<2x4xf32, #tpu.memory_space<vmem>>, vector<2x4xf32>
    tpu.vector_store %arg5[%c0_11, %c0_12], %15 {strides = array<i32>} : memref<2x4xf32, #tpu.memory_space<vmem>>, vector<2x4xf32>,
    return
  }
}

</mosaic_0001>

<llo_original>
// kernel: soft_channels.2
$region0: #{soft_channels.2}
  #allocation0 [shape = 'u32[]', space=smem, size = 0x4, offset = 0x4, fixed_abs, tag = 'smem constant byte address 0x4 - core index']
  #allocation1 [shape = 'u32[144,128]{1,0:T(1,128)}', space=vmem, size = 0x12000, scoped, tag = 'internal scratch']
  %s0 = inlined_call_operand.vmem [shape: f32[8,256], index: 0, kind: input, shape index: {}]
  %s1 = inlined_call_operand.vmem [shape: f32[8,1], index: 1, kind: output, shape index: {}]
  %s2 = sld [smem:[#allocation0]]
  $region18: #{soft_channels.2} parent=0
    _
  %s4 = ssub.s32 1, %s2
  %s5 = scalar_select 0, %s4, %s2
  // Predicated region
  $region2: #{soft_channels.2} parent=0 // pred_check
    _
  $region3: #{soft_channels.2} parent=0 // pred_check_branch
    %7 = sbr.rel (0) target = $region5
  $region4: #{soft_channels.2} parent=0 // pred_region
    _
  $region5: #{soft_channels.2} parent=0 // pred_fallthru
    _
  %p8 = scmp.eq.s32.totalorder 0, 0
  // Predicated region
  $region6: #{soft_channels.2} parent=0 // pred_check
    %p9 = pneg %p8
  $region7: #{soft_channels.2} parent=0 // pred_check_branch
    %11 = sbr.rel (%p9) target = $region9
  $region8: #{soft_channels.2} parent=0 // pred_region
    %vm12 = vcmask 7168
    %13 = vst.msk [vmem:[%s1] sm:$0xff] %vm12, -inf
  $region9: #{soft_channels.2} parent=0 // pred_fallthru
    _
  %v14 = vld [vmem:[%s0] sm:$0xff]
  %v15 = vld [vmem:[%s0 + $0x8] sm:$0xff]
  %v16 = vld [vmem:[%s1] sm:$0xff]
  %v17 = vmax.f32 %v14, %v15
  %18 = vmax.xlane.f32.xlu0 %v17
  %v19 = vpop.xlane.xlu0 %18
  %v20 = vmax.f32 %v16, %v19
  %vm21 = vcmask 7168
  %22 = vst.msk [vmem:[%s1] sm:$0xff] %vm21, %v20
  // Predicated region
  $region10: #{soft_channels.2} parent=0 // pred_check
    _
  $region11: #{soft_channels.2} parent=0 // pred_check_branch
    %24 = sbr.rel (0) target = $region13
  $region12: #{soft_channels.2} parent=0 // pred_region
    _
  $region13: #{soft_channels.2} parent=0 // pred_fallthru
    _
  // Predicated region
  $region14: #{soft_channels.2} parent=0 // pred_check
    _
  $region15: #{soft_channels.2} parent=0 // pred_check_branch
    %26 = sbr.rel (0) target = $region17
  $region16: #{soft_channels.2} parent=0 // pred_region
    _
  $region17: #{soft_channels.2} parent=0 // pred_fallthru
    _

// kernel: soft_channels.3
$region0: #{soft_channels.3}
  #allocation0 [shape = 'u32[]', space=smem, size = 0x4, offset = 0x4, fixed_abs, tag = 'smem constant byte address 0x4 - core index']
  #allocation1 [shape = 'u32[144,128]{1,0:T(1,128)}', space=vmem, size = 0x12000, scoped, tag = 'internal scratch']
  %s0 = inlined_call_operand.vmem [shape: f32[2,4], index: 0, kind: input, shape index: {}]
  %s1 = inlined_call_operand.vmem [shape: f32[4,2], index: 1, kind: input, shape index: {}]
  %s2 = inlined_call_operand.vmem [shape: f32[1,2], index: 2, kind: input, shape index: {}]
  %s3 = inlined_call_operand.vmem [shape: f32[2,4], index: 3, kind: input, shape index: {}]
  %s4 = inlined_call_operand.vmem [shape: f32[1,4], index: 4, kind: input, shape index: {}]
  %s5 = inlined_call_operand.hbm [shape: f32[2,4], index: 5, kind: output, shape index: {}]
  %s6 = sld [smem:[#allocation0]]
  $region30: #{soft_channels.3} parent=0
    _
  %s8 = ssub.s32 1, %s6
  %s9 = scalar_select 0, %s8, %s6
  $region1: #{soft_channels.3} parent=0
    #allocation2 [shape = 'u8[1024]{0}', space=vmem, size = 0x400, scoped, tag = 'output window, operand 0, single buffered']
    #allocation3 [shape = 's32[1]{0}', space=sflag, size = 0x4, scoped, tag = 'scoped memory for soft_channels.3']
    %10 = vsyncpa [#allocation3], 0
    // Predicated region
    $region2: #{soft_channels.3} parent=1 // pred_check
      _
    $region3: #{soft_channels.3} parent=1 // pred_check_branch
      %12 = sbr.rel (0) target = $region5
    $region4: #{soft_channels.3} parent=1 // pred_region
      _
    $region5: #{soft_channels.3} parent=1 // pred_fallthru
      _
    // Predicated region
    $region6: #{soft_channels.3} parent=1 // pred_check
      _
    $region7: #{soft_channels.3} parent=1 // pred_check_branch
      %14 = sbr.rel (0) target = $region9
    $region8: #{soft_channels.3} parent=1 // pred_region
      _
    $region9: #{soft_channels.3} parent=1 // pred_fallthru
      _
    // Predicated region
    $region10: #{soft_channels.3} parent=1 // pred_check
      _
    $region11: #{soft_channels.3} parent=1 // pred_check_branch
      %16 = sbr.rel (0) target = $region13
    $region12: #{soft_channels.3} parent=1 // pred_region
      _
    $region13: #{soft_channels.3} parent=1 // pred_fallthru
      _
    // Predicated region
    $region14: #{soft_channels.3} parent=1 // pred_check
      _
    $region15: #{soft_channels.3} parent=1 // pred_check_branch
      %18 = sbr.rel (0) target = $region17
    $region16: #{soft_channels.3} parent=1 // pred_region
      _
    $region17: #{soft_channels.3} parent=1 // pred_fallthru
      _
    // Predicated region
    $region18: #{soft_channels.3} parent=1 // pred_check
      _
    $region19: #{soft_channels.3} parent=1 // pred_check_branch
      %20 = sbr.rel (0) target = $region21
    $region20: #{soft_channels.3} parent=1 // pred_region
      _
    $region21: #{soft_channels.3} parent=1 // pred_fallthru
      _
    %v21 = vld [vmem:[%s0] sm:$0x3]
    %v22 = vld [vmem:[%s1] sm:$0xf]
    %v23 = vld [vmem:[%s2] sm:$0x1]
    %v25 = vlaneseq
    %v26 = vshrl.u32 %v25, 7
    %v27 = vsub.s32 0, %v26
    %v28 = vrot.slane %v23, %v27
    %vm30 = vcmask 31744
    %v32 = vsel %vm30, %v21, 0
    %vm34 = vcmask 1043456
    %v36 = vsel %vm34, %v22, 0
    %38 = vmatprep.subr.mxu0 0.0
    %39 = vmatpush1.msra.mxu0 0.0
    %40 = vmatprep.subr.mxu0 0.0
    %41 = vmatpush1.msra.mxu0 0.0
    %42 = vmatprep.subr.mxu0 0.0
    %43 = vmatpush1.msra.mxu0 0.0
    %44 = vmatprep.subr.mxu0 0.0
    %45 = vmatpush1.msra.mxu0 0.0
    %46 = vmatprep.subr.mxu0 0.0
    %47 = vmatpush1.msra.mxu0 0.0
    %48 = vmatprep.subr.mxu0 0.0
    %49 = vmatpush1.msra.mxu0 0.0
    %50 = vmatprep.subr.mxu0 0.0
    %51 = vmatpush1.msra.mxu0 0.0
    %52 = vmatprep.subr.mxu0 0.0
    %53 = vmatpush1.msra.mxu0 0.0
    %54 = vmatprep.subr.mxu0 0.0
    %55 = vmatpush1.msra.mxu0 0.0
    %56 = vmatprep.subr.mxu0 0.0
    %57 = vmatpush1.msra.mxu0 0.0
    %58 = vmatprep.subr.mxu0 0.0
    %59 = vmatpush1.msra.mxu0 0.0
    %60 = vmatprep.subr.mxu0 0.0
    %61 = vmatpush1.msra.mxu0 0.0
    %62 = vmatprep.subr.mxu0 0.0
    %63 = vmatpush1.msra.mxu0 0.0
    %64 = vmatprep.subr.mxu0 0.0
    %65 = vmatpush1.msra.mxu0 0.0
    %66 = vmatprep.subr.mxu0 0.0
    %67 = vmatpush1.msra.mxu0 0.0
    %68 = vmatprep.subr.mxu0 0.0
    %69 = vmatpush1.msra.mxu0 %v36
    %70 = vmatprep.subr.mxu0 0.0
    %71 = vmatpush2.msra.mxu0 0.0
    %72 = vmatprep.subr.mxu0 0.0
    %73 = vmatpush2.msra.mxu0 0.0
    %74 = vmatprep.subr.mxu0 0.0
    %75 = vmatpush2.msra.mxu0 0.0
    %76 = vmatprep.subr.mxu0 0.0
    %77 = vmatpush2.msra.mxu0 0.0
    %78 = vmatprep.subr.mxu0 0.0
    %79 = vmatpush2.msra.mxu0 0.0
    %80 = vmatprep.subr.mxu0 0.0
    %81 = vmatpush2.msra.mxu0 0.0
    %82 = vmatprep.subr.mxu0 0.0
    %83 = vmatpush2.msra.mxu0 0.0
    %84 = vmatprep.subr.mxu0 0.0
    %85 = vmatpush2.msra.mxu0 0.0
    %86 = vmatprep.subr.mxu0 0.0
    %87 = vmatpush2.msra.mxu0 0.0
    %88 = vmatprep.subr.mxu0 0.0
    %89 = vmatpush2.msra.mxu0 0.0
    %90 = vmatprep.subr.mxu0 0.0
    %91 = vmatpush2.msra.mxu0 0.0
    %92 = vmatprep.subr.mxu0 0.0
    %93 = vmatpush2.msra.mxu0 0.0
    %94 = vmatprep.subr.mxu0 0.0
    %95 = vmatpush2.msra.mxu0 0.0
    %96 = vmatprep.subr.mxu0 0.0
    %97 = vmatpush2.msra.mxu0 0.0
    %98 = vmatprep.subr.mxu0 0.0
    %99 = vmatpush2.msra.mxu0 0.0
    %100 = vmatprep.subr.mxu0 0.0
    %101 = vmatpush2.msra.mxu0 0.0
    %102 = vmatprep.mubr.f32.mxu0 0.0
    %103 = vmatmul.mubr.f32.gmra.mxu0 %v32
    %v104 = vpop.f32.mrf.mxu0
    %v105 = vadd.f32 %v28, %v104
    %v106 = vpop.f32.mrf.mxu0
    %107 = vdwg.mxu0
    %v108 = vld [vmem:[%s3] sm:$0x3]
    %v109 = vld [vmem:[%s4] sm:$0x1]
    %v111 = vlaneseq
    %v112 = vshrl.u32 %v111, 7
    %v113 = vsub.s32 0, %v112
    %v114 = vrot.slane %v109, %v113
    %vm116 = vcmask 15360
    %v118 = vsel %vm116, %v105, 0
    %vm120 = vcmask 1041408
    %v122 = vsel %vm120, %v108, 0
    %124 = vmatprep.subr.mxu0 0.0
    %125 = vmatpush1.msra.mxu0 0.0
    %126 = vmatprep.subr.mxu0 0.0
    %127 = vmatpush1.msra.mxu0 0.0
    %128 = vmatprep.subr.mxu0 0.0
    %129 = vmatpush1.msra.mxu0 0.0
    %130 = vmatprep.subr.mxu0 0.0
    %131 = vmatpush1.msra.mxu0 0.0
    %132 = vmatprep.subr.mxu0 0.0
    %133 = vmatpush1.msra.mxu0 0.0
    %134 = vmatprep.subr.mxu0 0.0
    %135 = vmatpush1.msra.mxu0 0.0
    %136 = vmatprep.subr.mxu0 0.0
    %137 = vmatpush1.msra.mxu0 0.0
    %138 = vmatprep.subr.mxu0 0.0
    %139 = vmatpush1.msra.mxu0 0.0
    %140 = vmatprep.subr.mxu0 0.0
    %141 = vmatpush1.msra.mxu0 0.0
    %142 = vmatprep.subr.mxu0 0.0
    %143 = vmatpush1.msra.mxu0 0.0
    %144 = vmatprep.subr.mxu0 0.0
    %145 = vmatpush1.msra.mxu0 0.0
    %146 = vmatprep.subr.mxu0 0.0
    %147 = vmatpush1.msra.mxu0 0.0
    %148 = vmatprep.subr.mxu0 0.0
    %149 = vmatpush1.msra.mxu0 0.0
    %150 = vmatprep.subr.mxu0 0.0
    %151 = vmatpush1.msra.mxu0 0.0
    %152 = vmatprep.subr.mxu0 0.0
    %153 = vmatpush1.msra.mxu0 0.0
    %154 = vmatprep.subr.mxu0 0.0
    %155 = vmatpush1.msra.mxu0 %v122
    %156 = vmatprep.subr.mxu0 0.0
    %157 = vmatpush2.msra.mxu0 0.0
    %158 = vmatprep.subr.mxu0 0.0
    %159 = vmatpush2.msra.mxu0 0.0
    %160 = vmatprep.subr.mxu0 0.0
    %161 = vmatpush2.msra.mxu0 0.0
    %162 = vmatprep.subr.mxu0 0.0
    %163 = vmatpush2.msra.mxu0 0.0
    %164 = vmatprep.subr.mxu0 0.0
    %165 = vmatpush2.msra.mxu0 0.0
    %166 = vmatprep.subr.mxu0 0.0
    %167 = vmatpush2.msra.mxu0 0.0
    %168 = vmatprep.subr.mxu0 0.0
    %169 = vmatpush2.msra.mxu0 0.0
    %170 = vmatprep.subr.mxu0 0.0
    %171 = vmatpush2.msra.mxu0 0.0
    %172 = vmatprep.subr.mxu0 0.0
    %173 = vmatpush2.msra.mxu0 0.0
    %174 = vmatprep.subr.mxu0 0.0
    %175 = vmatpush2.msra.mxu0 0.0
    %176 = vmatprep.subr.mxu0 0.0
    %177 = vmatpush2.msra.mxu0 0.0
    %178 = vmatprep.subr.mxu0 0.0
    %179 = vmatpush2.msra.mxu0 0.0
    %180 = vmatprep.subr.mxu0 0.0
    %181 = vmatpush2.msra.mxu0 0.0
    %182 = vmatprep.subr.mxu0 0.0
    %183 = vmatpush2.msra.mxu0 0.0
    %184 = vmatprep.subr.mxu0 0.0
    %185 = vmatpush2.msra.mxu0 0.0
    %186 = vmatprep.subr.mxu0 0.0
    %187 = vmatpush2.msra.mxu0 0.0
    %188 = vmatprep.mubr.f32.mxu0 0.0
    %189 = vmatmul.mubr.f32.gmra.mxu0 %v118
    %v190 = vpop.f32.mrf.mxu0
    %v191 = vadd.f32 %v114, %v190
    %v192 = vpop.f32.mrf.mxu0
    %193 = vdwg.mxu0
    %v194 = vxor.u32 %v191, 2147483648
    %v195 = vmul.f32 %v194, 1.442695
    %v196 = vpow.pop %v195
    %v197 = vadd.f32 %v196, 1.0
    %v198 = vrcp.pop %v197
    %v199 = vmul.f32 1.0, %v198
    %vm200 = vcmask 25600
    %201 = vst.msk [vmem:[#allocation2] sm:$0x3] %vm200, %v199
    // Predicated region
    $region22: #{soft_channels.3} parent=1 // pred_check
      _
    $region23: #{soft_channels.3} parent=1 // pred_check_branch
      %203 = sbr.rel (0) target = $region25
    $region24: #{soft_channels.3} parent=1 // pred_region
      %s205 = ssub.s32 32, 32
      %206 = vsyncadd [#allocation3], %s205
      %s208 = sshll.u32 [#allocation2], 4
      %s209 = int_to_ptr.vmem [resolvable:$true] %s208
      %211 = dma.vmem_to_hbm [thread:$0]  %s209, 32, %s5, [#allocation3]
    $region25: #{soft_channels.3} parent=1 // pred_fallthru
      _
    // Predicated region
    $region26: #{soft_channels.3} parent=1 // pred_check
      _
    $region27: #{soft_channels.3} parent=1 // pred_check_branch
      %213 = sbr.rel (0) target = $region29
    $region28: #{soft_channels.3} parent=1 // pred_region
      %214 = dma.done [#allocation3], 32
    $region29: #{soft_channels.3} parent=1 // pred_fallthru
      _
    %215 = vsyncpa [#allocation3], 1

</llo_original>
